<compile_context>
chip_gen: v5e
topology: v5e:2x2
jax: 0.10.0
libtpu: 0.0.40
codegen_flags: <defaults>
</compile_context>

<pallas_src>
import jax
import jax.numpy as jnp
from jax.experimental import pallas as pl
from jax.experimental.pallas import tpu as pltpu

STATE_DIM = 3
ACTION_DIM = 1
HIDDEN = 128
LOG_STD_MIN = -20.0
LOG_STD_MAX = 2.0
INIT_W = 0.003
HEAD_PAD = 128               # lane-dense fused head width: [mu | log_std | zeros]
_MAX_ROW_TILE = 1024         # per-step overhead amortization; VMEM still tiny
_MIN_ROW_TILE = 16           # bf16 vregs pack (16, 128)


def _round_up(x, m):
    return ((x + m - 1) // m) * m


def _pick_row_tile(batch):
    """Row tile: >=16, <=_MAX_ROW_TILE; for mid-sized batches keep >=2 grid
    steps so both v7x TensorCores get work under dimension_semantics."""
    if batch <= _MIN_ROW_TILE:
        return _MIN_ROW_TILE
    half = _round_up((batch + 1) // 2, _MIN_ROW_TILE)
    return min(_MAX_ROW_TILE, half)


def _policy_mlp_kernel(state_ref, w1t_ref, hb_ref, w2t_ref, w3t_ref,
                       wht_ref, bh_ref, out_ref):
    """One row-tile of the policy MLP.

    fc1 (K=3) runs on the VPU as 3 broadcast FMAs (a K=3 MXU contraction is
    >95% padding); fc2/fc3 and the fused head hit the MXU in bf16 with f32
    accumulation; the head is lane-padded to 128 so the final store is one
    unmasked 128-lane tile.
    """
    x = state_ref[...]                                   # (TM, S)  f32
    w1t = w1t_ref[...]                                   # (S, H)   f32
    hb = hb_ref[...]                                     # (3, H)   f32 biases

    # ---- fc1 on the VPU (K = STATE_DIM = 3) ------------------------------
    h = hb[0:1, :]                                       # (1, H), broadcasts
    for k in range(STATE_DIM):                           # static, unrolled
        h = h + x[:, k:k + 1] * w1t[k:k + 1, :]
    h = jnp.maximum(h, 0.0)                              # (TM, H) f32

    # ---- fc2 / fc3 on the MXU: bf16 in, f32 accumulate -------------------
    h = jnp.dot(h.astype(jnp.bfloat16), w2t_ref[...],
                preferred_element_type=jnp.float32)
    h = jnp.maximum(h + hb[1:2, :], 0.0)

    h = jnp.dot(h.astype(jnp.bfloat16), w3t_ref[...],
                preferred_element_type=jnp.float32)
    h = jnp.maximum(h + hb[2:3, :], 0.0)

    # ---- fused, lane-padded [mu | log_std | 0...] head --------------------
    out = jnp.dot(h.astype(jnp.bfloat16), wht_ref[...],
                  preferred_element_type=jnp.float32) + bh_ref[...]
    col = jax.lax.broadcasted_iota(jnp.int32, out.shape, 1)
    clipped = jnp.clip(out, LOG_STD_MIN, LOG_STD_MAX)
    out_ref[...] = jnp.where(col < ACTION_DIM, out, clipped)  # [mu | clamp(log_std) | 0]


def init_params(key, state_dim=STATE_DIM, action_dim=ACTION_DIM, hidden=HIDDEN):
    """Deterministic init mirroring the PyTorch module's __init__.

    fc1/fc2/fc3: PyTorch default Linear init U(-1/sqrt(fan_in), 1/sqrt(fan_in));
    mu/log_std: U(-init_w, init_w).  Weights stored in PyTorch layout
    (out_features, in_features); biases as (out_features,).
    """
    ks = jax.random.split(key, 10)

    def uniform(k, shape, bound):
        return jax.random.uniform(k, shape, jnp.float32, -bound, bound)

    b_fc1 = 1.0 / jnp.sqrt(jnp.float32(state_dim))
    b_fc = 1.0 / jnp.sqrt(jnp.float32(hidden))
    return {
        "fc1_w": uniform(ks[0], (hidden, state_dim), b_fc1),
        "fc1_b": uniform(ks[1], (hidden,), b_fc1),
        "fc2_w": uniform(ks[2], (hidden, hidden), b_fc),
        "fc2_b": uniform(ks[3], (hidden,), b_fc),
        "fc3_w": uniform(ks[4], (hidden, hidden), b_fc),
        "fc3_b": uniform(ks[5], (hidden,), b_fc),
        "mu_w": uniform(ks[6], (action_dim, hidden), INIT_W),
        "mu_b": uniform(ks[7], (action_dim,), INIT_W),
        "log_std_w": uniform(ks[8], (action_dim, hidden), INIT_W),
        "log_std_b": uniform(ks[9], (action_dim,), INIT_W),
    }


def pack_params(params):
    """One-time repack: transpose / cast / pad / concatenate OUTSIDE the hot path."""
    head_w = jnp.concatenate([params["mu_w"], params["log_std_w"]], 0).T   # (H, 2A)
    head_b = jnp.concatenate([params["mu_b"], params["log_std_b"]])        # (2A,)
    pad = HEAD_PAD - head_w.shape[1]
    return {
        # fc1 stays f32: it runs on the VPU (v5e has no bf16 VPU).
        "w1t": params["fc1_w"].T,                                          # (S, H) f32
        "hb": jnp.stack([params["fc1_b"], params["fc2_b"], params["fc3_b"]]),  # (3, H)
        # MXU layers pre-cast to bf16 (halves MXU cycles & weight bytes).
        "w2t": params["fc2_w"].T.astype(jnp.bfloat16),                     # (H, H)
        "w3t": params["fc3_w"].T.astype(jnp.bfloat16),                     # (H, H)
        # Fused head, zero-padded to 128 lanes for an unmasked output store.
        "wht": jnp.pad(head_w, ((0, 0), (0, pad))).astype(jnp.bfloat16),   # (H, 128)
        "bh": jnp.pad(head_b, (0, pad)).reshape(1, HEAD_PAD),              # (1, 128)
    }


@jax.jit
def policy_forward(state, packed):
    """state: (B, STATE_DIM) f32 -> (mu (B, A), log_std (B, A))."""
    B = state.shape[0]
    tm = _pick_row_tile(B)
    grid = (pl.cdiv(B, tm),)           # ragged final block handled by Pallas
    full = lambda i: (0, 0)            # weights resident across the grid

    out = pl.pallas_call(
        _policy_mlp_kernel,
        out_shape=jax.ShapeDtypeStruct((B, HEAD_PAD), jnp.float32),
        grid_spec=pltpu.PrefetchScalarGridSpec(
            num_scalar_prefetch=0,
            grid=grid,
            in_specs=[
                pl.BlockSpec((tm, STATE_DIM), lambda i: (i, 0)),   # state row tile
                pl.BlockSpec((STATE_DIM, HIDDEN), full),           # w1^T (f32)
                pl.BlockSpec((3, HIDDEN), full),                   # packed hidden biases
                pl.BlockSpec((HIDDEN, HIDDEN), full),              # w2^T (bf16)
                pl.BlockSpec((HIDDEN, HIDDEN), full),              # w3^T (bf16)
                pl.BlockSpec((HIDDEN, HEAD_PAD), full),            # fused head weight (bf16)
                pl.BlockSpec((1, HEAD_PAD), full),                 # fused head bias
            ],
            out_specs=pl.BlockSpec((tm, HEAD_PAD), lambda i: (i, 0)),
        ),
        compiler_params=pltpu.CompilerParams(
            dimension_semantics=("parallel",)),
    )(state, packed["w1t"], packed["hb"], packed["w2t"], packed["w3t"],
      packed["wht"], packed["bh"])

    return out[:, :ACTION_DIM], out[:, ACTION_DIM:2 * ACTION_DIM]


def policy_forward_ref(state, params):
    """Pure-JAX f32 reference (PyTorch semantics of the implied forward)."""
    h = jax.nn.relu(state @ params["fc1_w"].T + params["fc1_b"])
    h = jax.nn.relu(h @ params["fc2_w"].T + params["fc2_b"])
    h = jax.nn.relu(h @ params["fc3_w"].T + params["fc3_b"])
    mu = h @ params["mu_w"].T + params["mu_b"]
    log_std = jnp.clip(h @ params["log_std_w"].T + params["log_std_b"],
                       LOG_STD_MIN, LOG_STD_MAX)
    return mu, log_std


if __name__ == "__main__":
    key = jax.random.PRNGKey(0)
    k_params, k_state = jax.random.split(key)

    params = init_params(k_params)
    packed = pack_params(params)          # one-time repack (outside hot path)

    ok = True
    # 8: aligned; 5: sub-tile ragged batch; 37: multi-step grid with ragged last block.
    for batch in (8, 5, 37):
        state = jax.random.normal(jax.random.fold_in(k_state, batch),
                                  (batch, STATE_DIM), jnp.float32)
        mu, log_std = policy_forward(state, packed)
        jax.block_until_ready((mu, log_std))

        mu_ref, log_std_ref = policy_forward_ref(state, params)
        ok &= mu.shape == (batch, ACTION_DIM) and log_std.shape == (batch, ACTION_DIM)
        # Looser tolerance: fc2/fc3/head weights & activations are bf16 (f32 accumulate).
        ok &= bool(jnp.allclose(mu, mu_ref, atol=5e-3, rtol=1e-2))
        ok &= bool(jnp.allclose(log_std, log_std_ref, atol=5e-3, rtol=1e-2))

    assert ok
    print("KERNEL_OK")
</pallas_src>

<mosaic_0001>
module attributes {stable_mosaic.version = 11 : i64} {
  func.func @_policy_mlp_kernel(%arg0: i32, %arg1: memref<16x3xf32, #tpu.memory_space<vmem>>, %arg2: memref<3x128xf32, #tpu.memory_space<vmem>>, %arg3: memref<3x128xf32, #tpu.memory_space<vmem>>, %arg4: memref<128x128xbf16, #tpu.memory_space<vmem>>, %arg5: memref<128x128xbf16, #tpu.memory_space<vmem>>, %arg6: memref<128x128xbf16, #tpu.memory_space<vmem>>, %arg7: memref<1x128xf32, #tpu.memory_space<vmem>>, %arg8: memref<16x128xf32, #tpu.memory_space<vmem>>) attributes {dimension_semantics = [#tpu.dimension_semantics<parallel>], iteration_bounds = array<i64: 1>, scalar_prefetch = 0 : i64, scratch_operands = 0 : i64, tpu.core_type = #tpu.core_type<tc>, window_params = [{transform_indices = @transform_0, window_bounds = array<i64: 16, 3>}, {pipeline_mode = #tpu.pipeline_mode<synchronous>, transform_indices = @transform_1, window_bounds = array<i64: 3, 128>}, {pipeline_mode = #tpu.pipeline_mode<synchronous>, transform_indices = @transform_2, window_bounds = array<i64: 3, 128>}, {pipeline_mode = #tpu.pipeline_mode<synchronous>, transform_indices = @transform_3, window_bounds = array<i64: 128, 128>}, {pipeline_mode = #tpu.pipeline_mode<synchronous>, transform_indices = @transform_4, window_bounds = array<i64: 128, 128>}, {pipeline_mode = #tpu.pipeline_mode<synchronous>, transform_indices = @transform_5, window_bounds = array<i64: 128, 128>}, {pipeline_mode = #tpu.pipeline_mode<synchronous>, transform_indices = @transform_6, window_bounds = array<i64: 1, 128>}, {transform_indices = @transform_7, window_bounds = array<i64: 16, 128>}]} {
    %c0 = arith.constant 0 : index
    %c0_0 = arith.constant 0 : index
    %0 = vector.load %arg1[%c0, %c0_0] : memref<16x3xf32, #tpu.memory_space<vmem>>, vector<16x3xf32>
    %c0_1 = arith.constant 0 : index
    %c0_2 = arith.constant 0 : index
    %1 = vector.load %arg2[%c0_1, %c0_2] : memref<3x128xf32, #tpu.memory_space<vmem>>, vector<3x128xf32>
    %c0_3 = arith.constant 0 : index
    %c0_4 = arith.constant 0 : index
    %2 = vector.load %arg3[%c0_3, %c0_4] : memref<3x128xf32, #tpu.memory_space<vmem>>, vector<3x128xf32>
    %3 = vector.extract_strided_slice %2 {offsets = [0, 0], sizes = [1, 128], strides = [1, 1]} : vector<3x128xf32> to vector<1x128xf32>
    %4 = vector.extract_strided_slice %0 {offsets = [0, 0], sizes = [16, 1], strides = [1, 1]} : vector<16x3xf32> to vector<16x1xf32>
    %5 = vector.extract_strided_slice %1 {offsets = [0, 0], sizes = [1, 128], strides = [1, 1]} : vector<3x128xf32> to vector<1x128xf32>
    %6 = vector.broadcast %4 : vector<16x1xf32> to vector<16x128xf32>
    %7 = vector.broadcast %5 : vector<1x128xf32> to vector<16x128xf32>
    %8 = arith.mulf %6, %7 : vector<16x128xf32>
    %9 = vector.broadcast %3 : vector<1x128xf32> to vector<16x128xf32>
    %10 = arith.addf %9, %8 : vector<16x128xf32>
    %11 = vector.extract_strided_slice %0 {offsets = [0, 1], sizes = [16, 1], strides = [1, 1]} : vector<16x3xf32> to vector<16x1xf32>
    %12 = vector.extract_strided_slice %1 {offsets = [1, 0], sizes = [1, 128], strides = [1, 1]} : vector<3x128xf32> to vector<1x128xf32>
    %13 = vector.broadcast %11 : vector<16x1xf32> to vector<16x128xf32>
    %14 = vector.broadcast %12 : vector<1x128xf32> to vector<16x128xf32>
    %15 = arith.mulf %13, %14 : vector<16x128xf32>
    %16 = arith.addf %10, %15 : vector<16x128xf32>
    %17 = vector.extract_strided_slice %0 {offsets = [0, 2], sizes = [16, 1], strides = [1, 1]} : vector<16x3xf32> to vector<16x1xf32>
    %18 = vector.extract_strided_slice %1 {offsets = [2, 0], sizes = [1, 128], strides = [1, 1]} : vector<3x128xf32> to vector<1x128xf32>
    %19 = vector.broadcast %17 : vector<16x1xf32> to vector<16x128xf32>
    %20 = vector.broadcast %18 : vector<1x128xf32> to vector<16x128xf32>
    %21 = arith.mulf %19, %20 : vector<16x128xf32>
    %22 = arith.addf %16, %21 : vector<16x128xf32>
    %cst = arith.constant 0.000000e+00 : f32
    %23 = vector.broadcast %cst : f32 to vector<16x128xf32>
    %24 = arith.maximumf %22, %23 : vector<16x128xf32>
    %25 = arith.truncf %24 : vector<16x128xf32> to vector<16x128xbf16>
    %c0_5 = arith.constant 0 : index
    %c0_6 = arith.constant 0 : index
    %26 = vector.load %arg4[%c0_5, %c0_6] : memref<128x128xbf16, #tpu.memory_space<vmem>>, vector<128x128xbf16>
    %cst_7 = arith.constant dense<0.000000e+00> : vector<16x128xf32>
    %27 = tpu.matmul %25, %26, %cst_7 {dimension_numbers = #tpu.dot_dimension_numbers<[1], [0], [0], [1], [0, 0, 1, 1], [], []>} : vector<16x128xbf16>, vector<128x128xbf16>, vector<16x128xf32> -> vector<16x128xf32>
    %28 = vector.extract_strided_slice %2 {offsets = [1, 0], sizes = [1, 128], strides = [1, 1]} : vector<3x128xf32> to vector<1x128xf32>
    %29 = vector.broadcast %28 : vector<1x128xf32> to vector<16x128xf32>
    %30 = arith.addf %27, %29 : vector<16x128xf32>
    %cst_8 = arith.constant 0.000000e+00 : f32
    %31 = vector.broadcast %cst_8 : f32 to vector<16x128xf32>
    %32 = arith.maximumf %30, %31 : vector<16x128xf32>
    %33 = arith.truncf %32 : vector<16x128xf32> to vector<16x128xbf16>
    %c0_9 = arith.constant 0 : index
    %c0_10 = arith.constant 0 : index
    %34 = vector.load %arg5[%c0_9, %c0_10] : memref<128x128xbf16, #tpu.memory_space<vmem>>, vector<128x128xbf16>
    %cst_11 = arith.constant dense<0.000000e+00> : vector<16x128xf32>
    %35 = tpu.matmul %33, %34, %cst_11 {dimension_numbers = #tpu.dot_dimension_numbers<[1], [0], [0], [1], [0, 0, 1, 1], [], []>} : vector<16x128xbf16>, vector<128x128xbf16>, vector<16x128xf32> -> vector<16x128xf32>
    %36 = vector.extract_strided_slice %2 {offsets = [2, 0], sizes = [1, 128], strides = [1, 1]} : vector<3x128xf32> to vector<1x128xf32>
    %37 = vector.broadcast %36 : vector<1x128xf32> to vector<16x128xf32>
    %38 = arith.addf %35, %37 : vector<16x128xf32>
    %cst_12 = arith.constant 0.000000e+00 : f32
    %39 = vector.broadcast %cst_12 : f32 to vector<16x128xf32>
    %40 = arith.maximumf %38, %39 : vector<16x128xf32>
    %41 = arith.truncf %40 : vector<16x128xf32> to vector<16x128xbf16>
    %c0_13 = arith.constant 0 : index
    %c0_14 = arith.constant 0 : index
    %42 = vector.load %arg6[%c0_13, %c0_14] : memref<128x128xbf16, #tpu.memory_space<vmem>>, vector<128x128xbf16>
    %cst_15 = arith.constant dense<0.000000e+00> : vector<16x128xf32>
    %43 = tpu.matmul %41, %42, %cst_15 {dimension_numbers = #tpu.dot_dimension_numbers<[1], [0], [0], [1], [0, 0, 1, 1], [], []>} : vector<16x128xbf16>, vector<128x128xbf16>, vector<16x128xf32> -> vector<16x128xf32>
    %c0_16 = arith.constant 0 : index
    %c0_17 = arith.constant 0 : index
    %44 = vector.load %arg7[%c0_16, %c0_17] : memref<1x128xf32, #tpu.memory_space<vmem>>, vector<1x128xf32>
    %45 = vector.broadcast %44 : vector<1x128xf32> to vector<16x128xf32>
    %46 = arith.addf %43, %45 : vector<16x128xf32>
    %47 = tpu.iota {dimensions = array<i32: 1>} : vector<16x128xi32>
    %cst_18 = arith.constant -2.000000e+01 : f32
    %cst_19 = arith.constant 2.000000e+00 : f32
    %48 = vector.broadcast %cst_18 : f32 to vector<16x128xf32>
    %49 = arith.maximumf %48, %46 : vector<16x128xf32>
    %50 = vector.broadcast %cst_19 : f32 to vector<16x128xf32>
    %51 = arith.minimumf %50, %49 : vector<16x128xf32>
    %c1_i32 = arith.constant 1 : i32
    %52 = vector.broadcast %c1_i32 : i32 to vector<16x128xi32>
    %53 = arith.cmpi slt, %47, %52 : vector<16x128xi32>
    %54 = arith.select %53, %46, %51 : vector<16x128xi1>, vector<16x128xf32>
    %c0_20 = arith.constant 0 : index
    %c0_21 = arith.constant 0 : index
    %55 = vector.load %arg8[%c0_20, %c0_21] : memref<16x128xf32, #tpu.memory_space<vmem>>, vector<16x128xf32>
    tpu.vector_store %arg8[%c0_20, %c0_21], %54 {strides = array<i32>} : memref<16x128xf32, #tpu.memory_space<vmem>>, vector<16x128xf32>,
    return
  }
  func.func @transform_0(%arg0: i32) -> (i32, i32) {
    %c0_i32 = arith.constant 0 : i32
    %c0_i32_0 = arith.constant 0 : i32
    return %arg0, %c0_i32 : i32, i32
  }
  func.func @transform_1(%arg0: i32) -> (i32, i32) {
    %c0_i32 = arith.constant 0 : i32
    %c0_i32_0 = arith.constant 0 : i32
    %c0_i32_1 = arith.constant 0 : i32
    return %c0_i32, %c0_i32_0 : i32, i32
  }
  func.func @transform_2(%arg0: i32) -> (i32, i32) {
    %c0_i32 = arith.constant 0 : i32
    %c0_i32_0 = arith.constant 0 : i32
    %c0_i32_1 = arith.constant 0 : i32
    return %c0_i32, %c0_i32_0 : i32, i32
  }
  func.func @transform_3(%arg0: i32) -> (i32, i32) {
    %c0_i32 = arith.constant 0 : i32
    %c0_i32_0 = arith.constant 0 : i32
    %c0_i32_1 = arith.constant 0 : i32
    return %c0_i32, %c0_i32_0 : i32, i32
  }
  func.func @transform_4(%arg0: i32) -> (i32, i32) {
    %c0_i32 = arith.constant 0 : i32
    %c0_i32_0 = arith.constant 0 : i32
    %c0_i32_1 = arith.constant 0 : i32
    return %c0_i32, %c0_i32_0 : i32, i32
  }
  func.func @transform_5(%arg0: i32) -> (i32, i32) {
    %c0_i32 = arith.constant 0 : i32
    %c0_i32_0 = arith.constant 0 : i32
    %c0_i32_1 = arith.constant 0 : i32
    return %c0_i32, %c0_i32_0 : i32, i32
  }
  func.func @transform_6(%arg0: i32) -> (i32, i32) {
    %c0_i32 = arith.constant 0 : i32
    %c0_i32_0 = arith.constant 0 : i32
    %c0_i32_1 = arith.constant 0 : i32
    return %c0_i32, %c0_i32_0 : i32, i32
  }
  func.func @transform_7(%arg0: i32) -> (i32, i32) {
    %c0_i32 = arith.constant 0 : i32
    %c0_i32_0 = arith.constant 0 : i32
    return %arg0, %c0_i32 : i32, i32
  }
}

</mosaic_0001>

<llo_original>
// kernel: policy_forward.1
$region0: #{policy_forward.1}
  #allocation0 [shape = 'u32[]', space=smem, size = 0x4, offset = 0x4, fixed_abs, tag = 'smem constant byte address 0x4 - core index']
  #allocation1 [shape = 'u32[72,128]{1,0:T(1,128)}', space=vmem, size = 0x9000, scoped, tag = 'internal scratch']
  %s0 = inlined_call_operand.vmem [shape: f32[8,3], index: 0, kind: input, shape index: {}]
  %s1 = inlined_call_operand.vmem [shape: f32[3,128], index: 1, kind: input, shape index: {}]
  %s2 = inlined_call_operand.vmem [shape: f32[3,128], index: 2, kind: input, shape index: {}]
  %s3 = inlined_call_operand.hbm [shape: bf16[128,128], index: 3, kind: input, shape index: {}]
  %s4 = inlined_call_operand.hbm [shape: bf16[128,128], index: 4, kind: input, shape index: {}]
  %s5 = inlined_call_operand.hbm [shape: bf16[128,128], index: 5, kind: input, shape index: {}]
  %s6 = inlined_call_operand.vmem [shape: f32[1,128], index: 6, kind: input, shape index: {}]
  %s7 = inlined_call_operand.vmem [shape: f32[8,128], index: 7, kind: output, shape index: {}]
  %s8 = sld [smem:[#allocation0]]
  $region84: #{policy_forward.1} parent=0
    _
  %s10 = ssub.s32 1, %s8
  %s11 = scalar_select 0, %s10, %s8
  $region1: #{policy_forward.1} parent=0
    #allocation2 [shape = 'u8[32768]{0}', space=vmem, size = 0x8000, scoped, tag = 'input window, operand 3, single buffered']
    #allocation3 [shape = 's32[1]{0}', space=sflag, size = 0x4, scoped, tag = 'scoped memory for policy_forward.1']
    #allocation4 [shape = 'u8[32768]{0}', space=vmem, size = 0x8000, scoped, tag = 'input window, operand 4, single buffered']
    #allocation5 [shape = 's32[1]{0}', space=sflag, size = 0x4, scoped, tag = 'scoped memory for policy_forward.1']
    #allocation6 [shape = 'u8[32768]{0}', space=vmem, size = 0x8000, scoped, tag = 'input window, operand 5, single buffered']
    #allocation7 [shape = 'u8[8192]{0}', space=vmem, size = 0x2000, scoped, tag = 'output window, operand 0, single buffered']
    %12 = vsyncpa [#allocation3], 0
    %13 = vsyncpa [#allocation5], 0
    // Predicated region
    $region2: #{policy_forward.1} parent=1 // pred_check
      _
    $region3: #{policy_forward.1} parent=1 // pred_check_branch
      %15 = sbr.rel (0) target = $region5
    $region4: #{policy_forward.1} parent=1 // pred_region
      _
    $region5: #{policy_forward.1} parent=1 // pred_fallthru
      _
    // Predicated region
    $region6: #{policy_forward.1} parent=1 // pred_check
      _
    $region7: #{policy_forward.1} parent=1 // pred_check_branch
      %17 = sbr.rel (0) target = $region9
    $region8: #{policy_forward.1} parent=1 // pred_region
      _
    $region9: #{policy_forward.1} parent=1 // pred_fallthru
      _
    // Predicated region
    $region10: #{policy_forward.1} parent=1 // pred_check
      _
    $region11: #{policy_forward.1} parent=1 // pred_check_branch
      %19 = sbr.rel (0) target = $region13
    $region12: #{policy_forward.1} parent=1 // pred_region
      _
    $region13: #{policy_forward.1} parent=1 // pred_fallthru
      _
    // Predicated region
    $region14: #{policy_forward.1} parent=1 // pred_check
      _
    $region15: #{policy_forward.1} parent=1 // pred_check_branch
      %21 = sbr.rel (0) target = $region17
    $region16: #{policy_forward.1} parent=1 // pred_region
      %23 = vsyncadd [#allocation3], 0
      %s24 = sshll.u32 %s3, 4
      %s25 = int_to_ptr.hbm [resolvable:$true] %s24
      %s26 = sshll.u32 [#allocation2], 4
      %s27 = int_to_ptr.vmem [resolvable:$true] %s26
      %32 = dma.hbm_to_vmem [thread:$0]  %s25, 1024, %s27, [#allocation3], 64, 64, 4
    $region17: #{policy_forward.1} parent=1 // pred_fallthru
      _
    // Predicated region
    $region18: #{policy_forward.1} parent=1 // pred_check
      _
    $region19: #{policy_forward.1} parent=1 // pred_check_branch
      %34 = sbr.rel (0) target = $region21
    $region20: #{policy_forward.1} parent=1 // pred_region
      %36 = vsyncadd [#allocation5], 0
      %s37 = sshll.u32 %s4, 4
      %s38 = int_to_ptr.hbm [resolvable:$true] %s37
      %s39 = sshll.u32 [#allocation4], 4
      %s40 = int_to_ptr.vmem [resolvable:$true] %s39
      %45 = dma.hbm_to_vmem [thread:$0]  %s38, 1024, %s40, [#allocation5], 64, 64, 4
    $region21: #{policy_forward.1} parent=1 // pred_fallthru
      _
    // Predicated region
    $region22: #{policy_forward.1} parent=1 // pred_check
      _
    $region23: #{policy_forward.1} parent=1 // pred_check_branch
      %47 = sbr.rel (0) target = $region25
    $region24: #{policy_forward.1} parent=1 // pred_region
      %49 = vsyncadd [#allocation5], 0
      %s50 = sshll.u32 %s5, 4
      %s51 = int_to_ptr.hbm [resolvable:$true] %s50
      %s52 = sshll.u32 [#allocation6], 4
      %s53 = int_to_ptr.vmem [resolvable:$true] %s52
      %58 = dma.hbm_to_vmem [thread:$0]  %s51, 1024, %s53, [#allocation5], 64, 64, 4
    $region25: #{policy_forward.1} parent=1 // pred_fallthru
      _
    // Predicated region
    $region26: #{policy_forward.1} parent=1 // pred_check
      _
    $region27: #{policy_forward.1} parent=1 // pred_check_branch
      %60 = sbr.rel (0) target = $region29
    $region28: #{policy_forward.1} parent=1 // pred_region
      _
    $region29: #{policy_forward.1} parent=1 // pred_fallthru
      _
    // Predicated region
    $region30: #{policy_forward.1} parent=1 // pred_check
      _
    $region31: #{policy_forward.1} parent=1 // pred_check_branch
      %62 = sbr.rel (0) target = $region33
    $region32: #{policy_forward.1} parent=1 // pred_region
      %64 = dma.done [#allocation3], 1024
    $region33: #{policy_forward.1} parent=1 // pred_fallthru
      _
    // Predicated region
    $region34: #{policy_forward.1} parent=1 // pred_check
      _
    $region35: #{policy_forward.1} parent=1 // pred_check_branch
      %66 = sbr.rel (0) target = $region37
    $region36: #{policy_forward.1} parent=1 // pred_region
      %68 = dma.done [#allocation5], 1024
    $region37: #{policy_forward.1} parent=1 // pred_fallthru
      _
    // Predicated region
    $region38: #{policy_forward.1} parent=1 // pred_check
      _
    $region39: #{policy_forward.1} parent=1 // pred_check_branch
      %70 = sbr.rel (0) target = $region41
    $region40: #{policy_forward.1} parent=1 // pred_region
      %72 = dma.done [#allocation5], 1024
    $region41: #{policy_forward.1} parent=1 // pred_fallthru
      _
    %v73 = vld [vmem:[%s0] sm:$0xff]
    %v74 = vld [vmem:[%s0 + $0x8] sm:$0xff]
    %v75 = vld [vmem:[%s1] sm:$0x7]
    %v76 = vld [vmem:[%s2] sm:$0x7]
    %78 = vset.pattern.permute.xlu0 0
    %79 = vperm.xlu0 %78, %v73
    %v80 = vpop.permute.xlu0 %79
    %83 = vset.pattern.permute.xlu0 0
    %84 = vperm.xlu0 %83, %v74
    %v85 = vpop.permute.xlu0 %84
    %v87 = vperm.slane %v75, 0
    %v88 = vmul.f32 %v80, %v87
    %v89 = vmul.f32 %v85, %v87
    %v90 = vperm.slane %v76, 0
    %v91 = vadd.f32 %v90, %v88
    %v92 = vadd.f32 %v90, %v89
    %93 = vset.pattern.permute.xlu0 1
    %94 = vperm.xlu0 %93, %v73
    %v95 = vpop.permute.xlu0 %94
    %97 = vset.pattern.permute.xlu0 1
    %98 = vperm.xlu0 %97, %v74
    %v99 = vpop.permute.xlu0 %98
    %v101 = vperm.slane %v75, 1
    %v102 = vmul.f32 %v95, %v101
    %v103 = vmul.f32 %v99, %v101
    %v104 = vadd.f32 %v91, %v102
    %v105 = vadd.f32 %v92, %v103
    %106 = vset.pattern.permute.xlu0 2
    %107 = vperm.xlu0 %106, %v73
    %v108 = vpop.permute.xlu0 %107
    %110 = vset.pattern.permute.xlu0 2
    %111 = vperm.xlu0 %110, %v74
    %v112 = vpop.permute.xlu0 %111
    %v114 = vperm.slane %v75, 2
    %v115 = vmul.f32 %v108, %v114
    %v116 = vmul.f32 %v112, %v114
    %v117 = vadd.f32 %v104, %v115
    %v118 = vadd.f32 %v105, %v116
    %v119 = vmax.f32 %v117, 0.0
    %v120 = vmax.f32 %v118, 0.0
    %v121 = vpack.c.bf16 %v120, %v119
    %v122 = vld [vmem:[#allocation2] sm:$0xf]
    %v123 = vld [vmem:[#allocation2 + $0x4] sm:$0xf]
    %v124 = vld [vmem:[#allocation2 + $0x8] sm:$0xf]
    %v125 = vld [vmem:[#allocation2 + $0xc] sm:$0xf]
    %v126 = vld [vmem:[#allocation2 + $0x10] sm:$0xf]
    %v127 = vld [vmem:[#allocation2 + $0x14] sm:$0xf]
    %v128 = vld [vmem:[#allocation2 + $0x18] sm:$0xf]
    %v129 = vld [vmem:[#allocation2 + $0x1c] sm:$0xf]
    %v130 = vld [vmem:[#allocation2 + $0x20] sm:$0xf]
    %v131 = vld [vmem:[#allocation2 + $0x24] sm:$0xf]
    %v132 = vld [vmem:[#allocation2 + $0x28] sm:$0xf]
    %v133 = vld [vmem:[#allocation2 + $0x2c] sm:$0xf]
    %v134 = vld [vmem:[#allocation2 + $0x30] sm:$0xf]
    %v135 = vld [vmem:[#allocation2 + $0x34] sm:$0xf]
    %v136 = vld [vmem:[#allocation2 + $0x38] sm:$0xf]
    %v137 = vld [vmem:[#allocation2 + $0x3c] sm:$0xf]
    %v138 = vperm.slane %v76, 1
    %v155 = vunpack.c.l.b16 %v122
    %v156 = vunpack.c.l.b16 %v123
    %v157 = vunpack.c.l.b16 %v124
    %v158 = vunpack.c.l.b16 %v125
    %v159 = vunpack.c.l.b16 %v126
    %v160 = vunpack.c.l.b16 %v127
    %v161 = vunpack.c.l.b16 %v128
    %v162 = vunpack.c.l.b16 %v129
    %v163 = vunpack.c.l.b16 %v130
    %v164 = vunpack.c.l.b16 %v131
    %v165 = vunpack.c.l.b16 %v132
    %v166 = vunpack.c.l.b16 %v133
    %v167 = vunpack.c.l.b16 %v134
    %v168 = vunpack.c.l.b16 %v135
    %v169 = vunpack.c.l.b16 %v136
    %v170 = vunpack.c.l.b16 %v137
    %v171 = vpack.c.b16 %v156, %v155
    %v172 = vpack.c.b16 %v158, %v157
    %v173 = vpack.c.b16 %v160, %v159
    %v174 = vpack.c.b16 %v162, %v161
    %v175 = vpack.c.b16 %v164, %v163
    %v176 = vpack.c.b16 %v166, %v165
    %v177 = vpack.c.b16 %v168, %v167
    %v178 = vpack.c.b16 %v170, %v169
    %187 = vmatpush.bf16.msra.mxu0 %v178
    %188 = vmatpush.bf16.msra.mxu0 %v177
    %189 = vmatpush.bf16.msra.mxu0 %v176
    %190 = vmatpush.bf16.msra.mxu0 %v175
    %191 = vmatpush.bf16.msra.mxu0 %v174
    %192 = vmatpush.bf16.msra.mxu0 %v173
    %193 = vmatpush.bf16.msra.mxu0 %v172
    %194 = vmatpush.bf16.msra.mxu0 %v171
    %195 = vmatmul.bf16.gmra.mxu0 %v121
    %v196 = vpop.f32.mrf.mxu0
    %v197 = vadd.f32 %v138, %v196
    %v198 = vpop.f32.mrf.mxu0
    %v199 = vadd.f32 %v138, %v198
    %200 = vdwg.mxu0
    %v201 = vmax.f32 %v197, 0.0
    %v202 = vmax.f32 %v199, 0.0
    %v203 = vpack.c.bf16 %v202, %v201
    %v204 = vld [vmem:[#allocation4] sm:$0xf]
    %v205 = vld [vmem:[#allocation4 + $0x4] sm:$0xf]
    %v206 = vld [vmem:[#allocation4 + $0x8] sm:$0xf]
    %v207 = vld [vmem:[#allocation4 + $0xc] sm:$0xf]
    %v208 = vld [vmem:[#allocation4 + $0x10] sm:$0xf]
    %v209 = vld [vmem:[#allocation4 + $0x14] sm:$0xf]
    %v210 = vld [vmem:[#allocation4 + $0x18] sm:$0xf]
    %v211 = vld [vmem:[#allocation4 + $0x1c] sm:$0xf]
    %v212 = vld [vmem:[#allocation4 + $0x20] sm:$0xf]
    %v213 = vld [vmem:[#allocation4 + $0x24] sm:$0xf]
    %v214 = vld [vmem:[#allocation4 + $0x28] sm:$0xf]
    %v215 = vld [vmem:[#allocation4 + $0x2c] sm:$0xf]
    %v216 = vld [vmem:[#allocation4 + $0x30] sm:$0xf]
    %v217 = vld [vmem:[#allocation4 + $0x34] sm:$0xf]
    %v218 = vld [vmem:[#allocation4 + $0x38] sm:$0xf]
    %v219 = vld [vmem:[#allocation4 + $0x3c] sm:$0xf]
    %v220 = vperm.slane %v76, 2
    %v237 = vunpack.c.l.b16 %v204
    %v238 = vunpack.c.l.b16 %v205
    %v239 = vunpack.c.l.b16 %v206
    %v240 = vunpack.c.l.b16 %v207
    %v241 = vunpack.c.l.b16 %v208
    %v242 = vunpack.c.l.b16 %v209
    %v243 = vunpack.c.l.b16 %v210
    %v244 = vunpack.c.l.b16 %v211
    %v245 = vunpack.c.l.b16 %v212
    %v246 = vunpack.c.l.b16 %v213
    %v247 = vunpack.c.l.b16 %v214
    %v248 = vunpack.c.l.b16 %v215
    %v249 = vunpack.c.l.b16 %v216
    %v250 = vunpack.c.l.b16 %v217
    %v251 = vunpack.c.l.b16 %v218
    %v252 = vunpack.c.l.b16 %v219
    %v253 = vpack.c.b16 %v238, %v237
    %v254 = vpack.c.b16 %v240, %v239
    %v255 = vpack.c.b16 %v242, %v241
    %v256 = vpack.c.b16 %v244, %v243
    %v257 = vpack.c.b16 %v246, %v245
    %v258 = vpack.c.b16 %v248, %v247
    %v259 = vpack.c.b16 %v250, %v249
    %v260 = vpack.c.b16 %v252, %v251
    %269 = vmatpush.bf16.msra.mxu0 %v260
    %270 = vmatpush.bf16.msra.mxu0 %v259
    %271 = vmatpush.bf16.msra.mxu0 %v258
    %272 = vmatpush.bf16.msra.mxu0 %v257
    %273 = vmatpush.bf16.msra.mxu0 %v256
    %274 = vmatpush.bf16.msra.mxu0 %v255
    %275 = vmatpush.bf16.msra.mxu0 %v254
    %276 = vmatpush.bf16.msra.mxu0 %v253
    %277 = vmatmul.bf16.gmra.mxu0 %v203
    %v278 = vpop.f32.mrf.mxu0
    %v279 = vadd.f32 %v220, %v278
    %v280 = vpop.f32.mrf.mxu0
    %v281 = vadd.f32 %v220, %v280
    %282 = vdwg.mxu0
    %v283 = vmax.f32 %v279, 0.0
    %v284 = vmax.f32 %v281, 0.0
    %v285 = vpack.c.bf16 %v284, %v283
    %v286 = vld [vmem:[#allocation6] sm:$0xf]
    %v287 = vld [vmem:[#allocation6 + $0x4] sm:$0xf]
    %v288 = vld [vmem:[#allocation6 + $0x8] sm:$0xf]
    %v289 = vld [vmem:[#allocation6 + $0xc] sm:$0xf]
    %v290 = vld [vmem:[#allocation6 + $0x10] sm:$0xf]
    %v291 = vld [vmem:[#allocation6 + $0x14] sm:$0xf]
    %v292 = vld [vmem:[#allocation6 + $0x18] sm:$0xf]
    %v293 = vld [vmem:[#allocation6 + $0x1c] sm:$0xf]
    %v294 = vld [vmem:[#allocation6 + $0x20] sm:$0xf]
    %v295 = vld [vmem:[#allocation6 + $0x24] sm:$0xf]
    %v296 = vld [vmem:[#allocation6 + $0x28] sm:$0xf]
    %v297 = vld [vmem:[#allocation6 + $0x2c] sm:$0xf]
    %v298 = vld [vmem:[#allocation6 + $0x30] sm:$0xf]
    %v299 = vld [vmem:[#allocation6 + $0x34] sm:$0xf]
    %v300 = vld [vmem:[#allocation6 + $0x38] sm:$0xf]
    %v301 = vld [vmem:[#allocation6 + $0x3c] sm:$0xf]
    %v302 = vld [vmem:[%s6] sm:$0x1]
    %v304 = vperm.slane %v302, 0
    %v322 = vunpack.c.l.b16 %v286
    %v323 = vunpack.c.l.b16 %v287
    %v324 = vunpack.c.l.b16 %v288
    %v325 = vunpack.c.l.b16 %v289
    %v326 = vunpack.c.l.b16 %v290
    %v327 = vunpack.c.l.b16 %v291
    %v328 = vunpack.c.l.b16 %v292
    %v329 = vunpack.c.l.b16 %v293
    %v330 = vunpack.c.l.b16 %v294
    %v331 = vunpack.c.l.b16 %v295
    %v332 = vunpack.c.l.b16 %v296
    %v333 = vunpack.c.l.b16 %v297
    %v334 = vunpack.c.l.b16 %v298
    %v335 = vunpack.c.l.b16 %v299
    %v336 = vunpack.c.l.b16 %v300
    %v337 = vunpack.c.l.b16 %v301
    %v338 = vpack.c.b16 %v323, %v322
    %v339 = vpack.c.b16 %v325, %v324
    %v340 = vpack.c.b16 %v327, %v326
    %v341 = vpack.c.b16 %v329, %v328
    %v342 = vpack.c.b16 %v331, %v330
    %v343 = vpack.c.b16 %v333, %v332
    %v344 = vpack.c.b16 %v335, %v334
    %v345 = vpack.c.b16 %v337, %v336
    %354 = vmatpush.bf16.msra.mxu0 %v345
    %355 = vmatpush.bf16.msra.mxu0 %v344
    %356 = vmatpush.bf16.msra.mxu0 %v343
    %357 = vmatpush.bf16.msra.mxu0 %v342
    %358 = vmatpush.bf16.msra.mxu0 %v341
    %359 = vmatpush.bf16.msra.mxu0 %v340
    %360 = vmatpush.bf16.msra.mxu0 %v339
    %361 = vmatpush.bf16.msra.mxu0 %v338
    %362 = vmatmul.bf16.gmra.mxu0 %v285
    %v363 = vpop.f32.mrf.mxu0
    %v364 = vadd.f32 %v304, %v363
    %v365 = vpop.f32.mrf.mxu0
    %v366 = vadd.f32 %v304, %v365
    %367 = vdwg.mxu0
    %v368 = vlaneseq
    %v369 = vand.u32 %v368, 127
    %v370 = vmax.f32 %v364, -20.0
    %v371 = vmax.f32 %v366, -20.0
    %v372 = vmin.f32 %v370, 2.0
    %v373 = vmin.f32 %v371, 2.0
    %vm374 = vcmp.lt.s32.totalorder %v369, 1
    %v375 = vsel %vm374, %v364, %v372
    %v376 = vsel %vm374, %v366, %v373
    %377 = vst [vmem:[#allocation7] sm:$0xff] %v375
    %378 = vst [vmem:[#allocation7 + $0x8] sm:$0xff] %v376
    // Predicated region
    $region42: #{policy_forward.1} parent=1 // pred_check
      _
    $region43: #{policy_forward.1} parent=1 // pred_check_branch
      %380 = sbr.rel (0) target = $region45
    $region44: #{policy_forward.1} parent=1 // pred_region
      // Predicated region
      $region46: #{policy_forward.1} parent=44 // pred_check
        _
      $region47: #{policy_forward.1} parent=44 // pred_check_branch
        %382 = sbr.rel (0) target = $region49
      $region48: #{policy_forward.1} parent=44 // pred_region
        // Predicated region
        $region50: #{policy_forward.1} parent=48 // pred_check
          _
        $region51: #{policy_forward.1} parent=48 // pred_check_branch
          %384 = sbr.rel (0) target = $region53
        $region52: #{policy_forward.1} parent=48 // pred_region
          // Predicated region
          $region65: #{policy_forward.1} parent=52 // pred_check
            _
          $region66: #{policy_forward.1} parent=52 // pred_check_branch
            %400 = sbr.rel (0) target = $region68
          $region67: #{policy_forward.1} parent=52 // pred_region
            loop: start=0, step=1, limit=1
            $region69: #{policy_forward.1} parent=67 // loop_pre_header
              _
            $region70: #{policy_forward.1} parent=67 // loop_header
              %s402 = sphi 0, %s406
              %p403 = scmp.ge.s32.totalorder %s402, 1
              %s407 = sphi [#allocation7], [#allocation7]
              %s408 = sphi %s7, %s7
            $region71: #{policy_forward.1} parent=67 // loop_header_branch
              %405 = sbr.rel (%p403) target = $region75
            $region72: #{policy_forward.1} parent=67 // loop_body
              %v409 = vld [vmem:[%s407] sm:$0xff]
              %410 = vst [vmem:[%s408] sm:$0xff] %v409
            $region73: #{policy_forward.1} parent=67 // loop_footer
              %s406 = sadd.s32 1, %s402
            $region74: #{policy_forward.1} parent=67 // loop_footer_branch
              %401 = sbr.rel target = $region70
            $region75: #{policy_forward.1} parent=67 // loop_exit
              _
          $region68: #{policy_forward.1} parent=52 // pred_fallthru
            _
          // Predicated region
          $region76: #{policy_forward.1} parent=52 // pred_check
            _
          $region77: #{policy_forward.1} parent=52 // pred_check_branch
            %412 = sbr.rel target = $region79
          $region78: #{policy_forward.1} parent=52 // pred_region
            _
          $region79: #{policy_forward.1} parent=52 // pred_fallthru
            _
        $region53: #{policy_forward.1} parent=48 // pred_fallthru
          _
        // Predicated region
        $region54: #{policy_forward.1} parent=48 // pred_check
          _
        $region55: #{policy_forward.1} parent=48 // pred_check_branch
          %386 = sbr.rel target = $region57
        $region56: #{policy_forward.1} parent=48 // pred_region
          %s388 = ssub.s32 256, 1
          loop: start=0, step=1, limit=1
          $region58: #{policy_forward.1} parent=56 // loop_pre_header
            _
          $region59: #{policy_forward.1} parent=56 // loop_header
            %s390 = sphi 0, %s394
            %p391 = scmp.ge.s32.totalorder %s390, 1
            %s395 = sphi [#allocation7], [#allocation7]
            %s396 = sphi %s7, %s7
          $region60: #{policy_forward.1} parent=56 // loop_header_branch
            %393 = sbr.rel (%p391) target = $region64
          $region61: #{policy_forward.1} parent=56 // loop_body
            %v397 = vld [vmem:[%s395] sm:%s388]
            %398 = vst [vmem:[%s396] sm:%s388] %v397
          $region62: #{policy_forward.1} parent=56 // loop_footer
            %s394 = sadd.s32 1, %s390
          $region63: #{policy_forward.1} parent=56 // loop_footer_branch
            %389 = sbr.rel target = $region59
          $region64: #{policy_forward.1} parent=56 // loop_exit
            _
        $region57: #{policy_forward.1} parent=48 // pred_fallthru
          _
      $region49: #{policy_forward.1} parent=44 // pred_fallthru
        _
      %413 = vnop
    $region45: #{policy_forward.1} parent=1 // pred_fallthru
      _
    // Predicated region
    $region80: #{policy_forward.1} parent=1 // pred_check
      _
    $region81: #{policy_forward.1} parent=1 // pred_check_branch
      %415 = sbr.rel (0) target = $region83
    $region82: #{policy_forward.1} parent=1 // pred_region
      _
    $region83: #{policy_forward.1} parent=1 // pred_fallthru
      _
    %416 = vsyncpa [#allocation3], 1
    %417 = vsyncpa [#allocation5], 1

</llo_original>
